<compile_context>
chip_gen: v7x
topology: tpu7x:2x2x1
jax: 0.10.0
libtpu: 0.0.40
codegen_flags: <defaults>
</compile_context>

<pallas_src>
import jax
import jax.numpy as jnp
from jax.experimental import pallas as pl
from jax.experimental.pallas import tpu as pltpu


def _biaffine_kernel(x1_ref, x2_ref, w1_ref, w2_ref, b_ref, o_ref):
    # out = concat(x1, x2) @ W + b == x1 @ W1 + x2 @ W2 + b
    acc = jnp.dot(x1_ref[...], w1_ref[...], preferred_element_type=jnp.float32)
    acc = acc + jnp.dot(x2_ref[...], w2_ref[...], preferred_element_type=jnp.float32)
    o_ref[...] = (acc + b_ref[...]).astype(o_ref.dtype)  # bias broadcasts over rows


def _round_up(x, m):
    return (x + m - 1) // m * m


def _vmem_physical_bytes():
    try:
        return int(pltpu.get_tpu_info().vmem_capacity_bytes)
    except Exception:
        return 64 * 1024 * 1024  # conservative (v7x per-TC VMEM)


def _want_core_parallel():
    """Only CORE_PARALLEL actually splits the grid across TensorCores (v7x)."""
    try:
        kind = jax.devices()[0].device_kind.lower()
    except Exception:
        return False
    return ("v7" in kind) or ("tpu7" in kind.replace(" ", ""))


def _choose_tile_rows(rows, in_f, out_f, x_itemsize, out_itemsize,
                      vmem_budget, single_buffer_weights):
    """Largest sublane-aligned row tile whose pipelined footprint fits VMEM.

    Layout-aware: lane dims padded to 128, row tile aligned to the dtype's
    sublane packing.  Row cap is a streamed-bytes-per-step target rather than
    a fixed row count (tighter on small-VMEM chips such as v7x).
    """
    in_pad = _round_up(in_f, 128)
    out_pad = _round_up(out_f, 128)
    sub = {4: 8, 2: 16, 1: 32}.get(int(x_itemsize), 8)

    w_bufs = 1 if single_buffer_weights else 2
    # W1 + W2 (f32) + bias (occupies >= 8 sublanes in VMEM).
    resident = w_bufs * (2 * in_pad * out_pad * 4 + 8 * out_pad * 4)
    # Streamed per row: x1 + x2 (double-buffered) + out (double-buffered).
    per_row = 2 * 2 * in_pad * x_itemsize + 2 * out_pad * out_itemsize

    avail = vmem_budget - resident
    if avail < per_row * sub:
        return 0  # does not fit sensibly -> caller falls back to plain jnp

    stream_per_row = 2 * in_pad * x_itemsize + out_pad * out_itemsize
    stream_target = (6 << 20) if vmem_budget > (64 << 20) else (3 << 20)
    row_cap = max(512, stream_target // stream_per_row)

    tm = min(row_cap, avail // per_row, rows)
    if tm < rows:
        tm = (tm // sub) * sub  # sublane-aligned (or == full dim)
    return int(tm)


def prepare_params(weight, bias):
    """Hoisted parameter prep (call ONCE, not per forward).

    weight: [out_features, 2*in_features] (PyTorch nn.Linear layout)
    bias:   [out_features]
    Returns (w1, w2, b2d): w1/w2 [in_f, out_f] f32, b2d [1, out_f] f32.
    No lane padding: the kernel stores the exact output width.
    """
    out_f, two_in = weight.shape
    in_f = two_in // 2
    w_t = jnp.asarray(weight, jnp.float32).T  # [2*in, out]
    w1 = w_t[:in_f, :]
    w2 = w_t[in_f:, :]
    b2d = jnp.asarray(bias, jnp.float32).reshape(1, out_f)
    return w1, w2, b2d


def biaffine_attention(x1, x2, w1, w2, b2d, *, out_dtype=jnp.float32,
                       min_rows_for_pallas=2048):
    """x1, x2: [..., in_features] (any float dtype; bf16 streams as-is, f32 accumulate).
    w1, w2, b2d: from prepare_params.  Returns [..., out_features] in out_dtype
    (default float32, matching the PyTorch module's .float() output)."""
    in_f = x1.shape[-1]
    out_f = w1.shape[-1]
    lead = x1.shape[:-1]
    rows = 1
    for d in lead:
        rows *= int(d)

    x1_2d = x1.reshape(rows, in_f)
    x2_2d = x2.reshape(rows, in_f)
    x_itemsize = jnp.dtype(x1.dtype).itemsize
    out_itemsize = jnp.dtype(out_dtype).itemsize

    physical = _vmem_physical_bytes()
    vmem_limit = int(0.75 * physical)       # above scoped defaults, below physical
    tile_budget = vmem_limit - (4 << 20)    # headroom for compiler internal scratch

    cost = pl.CostEstimate(
        flops=4 * rows * in_f * out_f,      # 2*M*K*N with K = 2*in_f
        transcendentals=0,
        bytes_accessed=(2 * rows * in_f * x_itemsize
                        + (2 * in_f * out_f + out_f) * 4
                        + rows * out_f * out_itemsize),
    )

    def run_pallas(single_buffer_weights, core_parallel):
        tm = _choose_tile_rows(rows, in_f, out_f, x_itemsize, out_itemsize,
                               tile_budget, single_buffer_weights)
        if tm <= 0:
            raise ValueError("tile does not fit in the VMEM budget")
        w_kwargs = {}
        if single_buffer_weights:
            # Grid-invariant operands: no need for double-buffering.
            w_kwargs["pipeline_mode"] = pl.Buffered(buffer_count=1)
        in_specs = [
            pl.BlockSpec((tm, in_f), lambda i: (i, 0)),              # x1 row tile
            pl.BlockSpec((tm, in_f), lambda i: (i, 0)),              # x2 row tile
            pl.BlockSpec((in_f, out_f), lambda i: (0, 0), **w_kwargs),  # W1 (resident)
            pl.BlockSpec((in_f, out_f), lambda i: (0, 0), **w_kwargs),  # W2 (resident)
            pl.BlockSpec((1, out_f), lambda i: (0, 0), **w_kwargs),     # bias (resident)
        ]
        sem = (pltpu.CORE_PARALLEL,) if core_parallel else ("parallel",)
        return pl.pallas_call(
            _biaffine_kernel,
            out_shape=jax.ShapeDtypeStruct((rows, out_f), out_dtype),
            grid=(pl.cdiv(rows, tm),),
            in_specs=in_specs,
            out_specs=pl.BlockSpec((tm, out_f), lambda i: (i, 0)),
            compiler_params=pltpu.CompilerParams(
                dimension_semantics=sem,
                vmem_limit_bytes=vmem_limit,
            ),
            cost_estimate=cost,
        )(x1_2d, x2_2d, w1, w2, b2d)

    use_pallas = rows >= min_rows_for_pallas and _choose_tile_rows(
        rows, in_f, out_f, x_itemsize, out_itemsize, tile_budget, False) > 0

    if not use_pallas:
        # Tiny (or pathologically wide) problem: launch overhead dominates.
        y = (jnp.dot(x1_2d, w1, preferred_element_type=jnp.float32)
             + jnp.dot(x2_2d, w2, preferred_element_type=jnp.float32)
             + b2d).astype(out_dtype)
        return y.reshape(*lead, out_f)

    try:
        out2d = run_pallas(True, _want_core_parallel())
    except Exception:
        # Conservative config (default double-buffering, plain "parallel").
        out2d = run_pallas(False, False)

    return out2d.reshape(*lead, out_f)


def init_params(key, in_features, out_features):
    """Mirror the PyTorch module's init: weight ~ Normal(0,1) then weight /= weight.sum();
    bias keeps nn.Linear default init (uniform +/- 1/sqrt(fan_in))."""
    kw, kb = jax.random.split(key)
    weight = jax.random.normal(kw, (out_features, 2 * in_features), jnp.float32)
    weight = weight / jnp.sum(weight)
    bound = 1.0 / jnp.sqrt(2.0 * in_features)
    bias = jax.random.uniform(kb, (out_features,), jnp.float32, -bound, bound)
    return weight, bias


if __name__ == "__main__":
    key = jax.random.PRNGKey(0)
    k1, k2, kp = jax.random.split(key, 3)

    batch, seq, in_features, out_features = 2, 8, 32, 16
    x1 = jax.random.normal(k1, (batch, seq, in_features), jnp.float32)
    x2 = jax.random.normal(k2, (batch, seq, in_features), jnp.float32)
    weight, bias = init_params(kp, in_features, out_features)

    # Hoisted weight prep (transpose / split happens once, not per forward).
    w1, w2, b2d = prepare_params(weight, bias)

    # Force the Pallas path even at this toy size so the kernel is exercised.
    out = biaffine_attention(x1, x2, w1, w2, b2d, min_rows_for_pallas=0)
    jax.block_until_ready(out)

    # Reference check in plain JAX (same math as torch: linear(cat(x1, x2))).
    ref = jnp.concatenate([x1, x2], axis=-1) @ weight.T + bias
    assert out.shape == (batch, seq, out_features)
    assert out.dtype == jnp.float32
    assert jnp.allclose(out, ref, atol=1e-5, rtol=1e-5)

    print("KERNEL_OK")
</pallas_src>

<mosaic_0001>
module attributes {stable_mosaic.version = 11 : i64} {
  func.func @_biaffine_kernel(%arg0: i32, %arg1: memref<16x32xf32, #tpu.memory_space<vmem>>, %arg2: memref<16x32xf32, #tpu.memory_space<vmem>>, %arg3: memref<32x16xf32, #tpu.memory_space<vmem>>, %arg4: memref<32x16xf32, #tpu.memory_space<vmem>>, %arg5: memref<1x16xf32, #tpu.memory_space<vmem>>, %arg6: memref<16x16xf32, #tpu.memory_space<vmem>>) attributes {dimension_semantics = [#tpu.dimension_semantics<parallel>], iteration_bounds = array<i64: 1>, scalar_prefetch = 0 : i64, scratch_operands = 0 : i64, tpu.core_type = #tpu.core_type<tc>, window_params = [{transform_indices = @transform_0, window_bounds = array<i64: 16, 32>}, {transform_indices = @transform_1, window_bounds = array<i64: 16, 32>}, {pipeline_mode = #tpu.pipeline_mode<synchronous>, transform_indices = @transform_2, window_bounds = array<i64: 32, 16>}, {pipeline_mode = #tpu.pipeline_mode<synchronous>, transform_indices = @transform_3, window_bounds = array<i64: 32, 16>}, {pipeline_mode = #tpu.pipeline_mode<synchronous>, transform_indices = @transform_4, window_bounds = array<i64: 1, 16>}, {transform_indices = @transform_5, window_bounds = array<i64: 16, 16>}]} {
    %c0 = arith.constant 0 : index
    %c0_0 = arith.constant 0 : index
    %0 = vector.load %arg1[%c0, %c0_0] : memref<16x32xf32, #tpu.memory_space<vmem>>, vector<16x32xf32>
    %c0_1 = arith.constant 0 : index
    %c0_2 = arith.constant 0 : index
    %1 = vector.load %arg3[%c0_1, %c0_2] : memref<32x16xf32, #tpu.memory_space<vmem>>, vector<32x16xf32>
    %cst = arith.constant dense<0.000000e+00> : vector<16x16xf32>
    %2 = tpu.matmul %0, %1, %cst {dimension_numbers = #tpu.dot_dimension_numbers<[1], [0], [0], [1], [0, 0, 1, 1], [], []>} : vector<16x32xf32>, vector<32x16xf32>, vector<16x16xf32> -> vector<16x16xf32>
    %c0_3 = arith.constant 0 : index
    %c0_4 = arith.constant 0 : index
    %3 = vector.load %arg2[%c0_3, %c0_4] : memref<16x32xf32, #tpu.memory_space<vmem>>, vector<16x32xf32>
    %c0_5 = arith.constant 0 : index
    %c0_6 = arith.constant 0 : index
    %4 = vector.load %arg4[%c0_5, %c0_6] : memref<32x16xf32, #tpu.memory_space<vmem>>, vector<32x16xf32>
    %cst_7 = arith.constant dense<0.000000e+00> : vector<16x16xf32>
    %5 = tpu.matmul %3, %4, %cst_7 {dimension_numbers = #tpu.dot_dimension_numbers<[1], [0], [0], [1], [0, 0, 1, 1], [], []>} : vector<16x32xf32>, vector<32x16xf32>, vector<16x16xf32> -> vector<16x16xf32>
    %6 = arith.addf %2, %5 : vector<16x16xf32>
    %c0_8 = arith.constant 0 : index
    %c0_9 = arith.constant 0 : index
    %7 = vector.load %arg5[%c0_8, %c0_9] : memref<1x16xf32, #tpu.memory_space<vmem>>, vector<1x16xf32>
    %8 = vector.broadcast %7 : vector<1x16xf32> to vector<16x16xf32>
    %9 = arith.addf %6, %8 : vector<16x16xf32>
    %c0_10 = arith.constant 0 : index
    %c0_11 = arith.constant 0 : index
    %10 = vector.load %arg6[%c0_10, %c0_11] : memref<16x16xf32, #tpu.memory_space<vmem>>, vector<16x16xf32>
    tpu.vector_store %arg6[%c0_10, %c0_11], %9 {strides = array<i32>} : memref<16x16xf32, #tpu.memory_space<vmem>>, vector<16x16xf32>,
    return
  }
  func.func @transform_0(%arg0: i32) -> (i32, i32) {
    %c0_i32 = arith.constant 0 : i32
    %c0_i32_0 = arith.constant 0 : i32
    return %arg0, %c0_i32 : i32, i32
  }
  func.func @transform_1(%arg0: i32) -> (i32, i32) {
    %c0_i32 = arith.constant 0 : i32
    %c0_i32_0 = arith.constant 0 : i32
    return %arg0, %c0_i32 : i32, i32
  }
  func.func @transform_2(%arg0: i32) -> (i32, i32) {
    %c0_i32 = arith.constant 0 : i32
    %c0_i32_0 = arith.constant 0 : i32
    %c0_i32_1 = arith.constant 0 : i32
    return %c0_i32, %c0_i32_0 : i32, i32
  }
  func.func @transform_3(%arg0: i32) -> (i32, i32) {
    %c0_i32 = arith.constant 0 : i32
    %c0_i32_0 = arith.constant 0 : i32
    %c0_i32_1 = arith.constant 0 : i32
    return %c0_i32, %c0_i32_0 : i32, i32
  }
  func.func @transform_4(%arg0: i32) -> (i32, i32) {
    %c0_i32 = arith.constant 0 : i32
    %c0_i32_0 = arith.constant 0 : i32
    %c0_i32_1 = arith.constant 0 : i32
    return %c0_i32, %c0_i32_0 : i32, i32
  }
  func.func @transform_5(%arg0: i32) -> (i32, i32) {
    %c0_i32 = arith.constant 0 : i32
    %c0_i32_0 = arith.constant 0 : i32
    return %arg0, %c0_i32 : i32, i32
  }
}

module attributes {stable_mosaic.version = 11 : i64} {
  func.func @_biaffine_kernel(%arg0: i32, %arg1: memref<16x32xf32, #tpu.memory_space<vmem>>, %arg2: memref<16x32xf32, #tpu.memory_space<vmem>>, %arg3: memref<32x16xf32, #tpu.memory_space<vmem>>, %arg4: memref<32x16xf32, #tpu.memory_space<vmem>>, %arg5: memref<1x16xf32, #tpu.memory_space<vmem>>, %arg6: memref<16x16xf32, #tpu.memory_space<vmem>>) attributes {dimension_semantics = [#tpu.dimension_semantics<parallel>], iteration_bounds = array<i64: 1>, scalar_prefetch = 0 : i64, scratch_operands = 0 : i64, tpu.core_type = #tpu.core_type<tc>, window_params = [{transform_indices = @transform_0, window_bounds = array<i64: 16, 32>}, {transform_indices = @transform_1, window_bounds = array<i64: 16, 32>}, {pipeline_mode = #tpu.pipeline_mode<synchronous>, transform_indices = @transform_2, window_bounds = array<i64: 32, 16>}, {pipeline_mode = #tpu.pipeline_mode<synchronous>, transform_indices = @transform_3, window_bounds = array<i64: 32, 16>}, {pipeline_mode = #tpu.pipeline_mode<synchronous>, transform_indices = @transform_4, window_bounds = array<i64: 1, 16>}, {transform_indices = @transform_5, window_bounds = array<i64: 16, 16>}]} {
    %c0 = arith.constant 0 : index
    %c0_0 = arith.constant 0 : index
    %0 = vector.load %arg1[%c0, %c0_0] : memref<16x32xf32, #tpu.memory_space<vmem>>, vector<16x32xf32>
    %c0_1 = arith.constant 0 : index
    %c0_2 = arith.constant 0 : index
    %1 = vector.load %arg3[%c0_1, %c0_2] : memref<32x16xf32, #tpu.memory_space<vmem>>, vector<32x16xf32>
    %cst = arith.constant dense<0.000000e+00> : vector<16x16xf32>
    %2 = tpu.matmul %0, %1, %cst {dimension_numbers = #tpu.dot_dimension_numbers<[1], [0], [0], [1], [0, 0, 1, 1], [], []>} : vector<16x32xf32>, vector<32x16xf32>, vector<16x16xf32> -> vector<16x16xf32>
    %c0_3 = arith.constant 0 : index
    %c0_4 = arith.constant 0 : index
    %3 = vector.load %arg2[%c0_3, %c0_4] : memref<16x32xf32, #tpu.memory_space<vmem>>, vector<16x32xf32>
    %c0_5 = arith.constant 0 : index
    %c0_6 = arith.constant 0 : index
    %4 = vector.load %arg4[%c0_5, %c0_6] : memref<32x16xf32, #tpu.memory_space<vmem>>, vector<32x16xf32>
    %cst_7 = arith.constant dense<0.000000e+00> : vector<16x16xf32>
    %5 = tpu.matmul %3, %4, %cst_7 {dimension_numbers = #tpu.dot_dimension_numbers<[1], [0], [0], [1], [0, 0, 1, 1], [], []>} : vector<16x32xf32>, vector<32x16xf32>, vector<16x16xf32> -> vector<16x16xf32>
    %6 = arith.addf %2, %5 : vector<16x16xf32>
    %c0_8 = arith.constant 0 : index
    %c0_9 = arith.constant 0 : index
    %7 = vector.load %arg5[%c0_8, %c0_9] : memref<1x16xf32, #tpu.memory_space<vmem>>, vector<1x16xf32>
    %8 = vector.broadcast %7 : vector<1x16xf32> to vector<16x16xf32>
    %9 = arith.addf %6, %8 : vector<16x16xf32>
    %c0_10 = arith.constant 0 : index
    %c0_11 = arith.constant 0 : index
    %10 = vector.load %arg6[%c0_10, %c0_11] : memref<16x16xf32, #tpu.memory_space<vmem>>, vector<16x16xf32>
    tpu.vector_store %arg6[%c0_10, %c0_11], %9 {strides = array<i32>} : memref<16x16xf32, #tpu.memory_space<vmem>>, vector<16x16xf32>,
    return
  }
  func.func @transform_0(%arg0: i32) -> (i32, i32) {
    %c0_i32 = arith.constant 0 : i32
    %c0_i32_0 = arith.constant 0 : i32
    return %arg0, %c0_i32 : i32, i32
  }
  func.func @transform_1(%arg0: i32) -> (i32, i32) {
    %c0_i32 = arith.constant 0 : i32
    %c0_i32_0 = arith.constant 0 : i32
    return %arg0, %c0_i32 : i32, i32
  }
  func.func @transform_2(%arg0: i32) -> (i32, i32) {
    %c0_i32 = arith.constant 0 : i32
    %c0_i32_0 = arith.constant 0 : i32
    %c0_i32_1 = arith.constant 0 : i32
    return %c0_i32, %c0_i32_0 : i32, i32
  }
  func.func @transform_3(%arg0: i32) -> (i32, i32) {
    %c0_i32 = arith.constant 0 : i32
    %c0_i32_0 = arith.constant 0 : i32
    %c0_i32_1 = arith.constant 0 : i32
    return %c0_i32, %c0_i32_0 : i32, i32
  }
  func.func @transform_4(%arg0: i32) -> (i32, i32) {
    %c0_i32 = arith.constant 0 : i32
    %c0_i32_0 = arith.constant 0 : i32
    %c0_i32_1 = arith.constant 0 : i32
    return %c0_i32, %c0_i32_0 : i32, i32
  }
  func.func @transform_5(%arg0: i32) -> (i32, i32) {
    %c0_i32 = arith.constant 0 : i32
    %c0_i32_0 = arith.constant 0 : i32
    return %arg0, %c0_i32 : i32, i32
  }
}

</mosaic_0001>

<llo_original>
// kernel: tpu_custom_call.1
$region0: #{tpu_custom_call.1}
  #allocation0 [shape = 'u32[]', space=smem, size = 0x4, offset = 0x4, fixed_abs, tag = 'smem constant byte address 0x4 - core index']
  #allocation1 [shape = 'u32[144,128]{1,0:T(1,128)}', space=vmem, size = 0x12000, scoped, tag = 'internal scratch']
  %s0 = inlined_call_operand.vmem [shape: f32[16,32], index: 0, kind: input, shape index: {}]
  %s1 = inlined_call_operand.vmem [shape: f32[16,32], index: 1, kind: input, shape index: {}]
  %s2 = inlined_call_operand.vmem [shape: f32[32,16], index: 2, kind: input, shape index: {}]
  %s3 = inlined_call_operand.vmem [shape: f32[32,16], index: 3, kind: input, shape index: {}]
  %s4 = inlined_call_operand.vmem [shape: f32[1,16], index: 4, kind: input, shape index: {}]
  %s5 = inlined_call_operand.hbm [shape: f32[16,16], index: 5, kind: output, shape index: {}]
  %s6 = sld [smem:[#allocation0]]
  $region30: #{tpu_custom_call.1} parent=0
    _
  %s8 = ssub.s32 1, %s6
  %s9 = scalar_select 0, %s8, %s6
  $region1: #{tpu_custom_call.1} parent=0
    #allocation2 [shape = 'u8[8192]{0}', space=vmem, size = 0x2000, scoped, tag = 'output window, operand 0, single buffered']
    #allocation3 [shape = 's32[1]{0}', space=sflag, size = 0x4, scoped, tag = 'scoped memory for tpu_custom_call.1']
    %10 = vsyncpa [#allocation3], 0
    // Predicated region
    $region2: #{tpu_custom_call.1} parent=1 // pred_check
      _
    $region3: #{tpu_custom_call.1} parent=1 // pred_check_branch
      %12 = sbr.rel (0) target = $region5
    $region4: #{tpu_custom_call.1} parent=1 // pred_region
      _
    $region5: #{tpu_custom_call.1} parent=1 // pred_fallthru
      _
    // Predicated region
    $region6: #{tpu_custom_call.1} parent=1 // pred_check
      _
    $region7: #{tpu_custom_call.1} parent=1 // pred_check_branch
      %14 = sbr.rel (0) target = $region9
    $region8: #{tpu_custom_call.1} parent=1 // pred_region
      _
    $region9: #{tpu_custom_call.1} parent=1 // pred_fallthru
      _
    // Predicated region
    $region10: #{tpu_custom_call.1} parent=1 // pred_check
      _
    $region11: #{tpu_custom_call.1} parent=1 // pred_check_branch
      %16 = sbr.rel (0) target = $region13
    $region12: #{tpu_custom_call.1} parent=1 // pred_region
      _
    $region13: #{tpu_custom_call.1} parent=1 // pred_fallthru
      _
    // Predicated region
    $region14: #{tpu_custom_call.1} parent=1 // pred_check
      _
    $region15: #{tpu_custom_call.1} parent=1 // pred_check_branch
      %18 = sbr.rel (0) target = $region17
    $region16: #{tpu_custom_call.1} parent=1 // pred_region
      _
    $region17: #{tpu_custom_call.1} parent=1 // pred_fallthru
      _
    // Predicated region
    $region18: #{tpu_custom_call.1} parent=1 // pred_check
      _
    $region19: #{tpu_custom_call.1} parent=1 // pred_check_branch
      %20 = sbr.rel (0) target = $region21
    $region20: #{tpu_custom_call.1} parent=1 // pred_region
      _
    $region21: #{tpu_custom_call.1} parent=1 // pred_fallthru
      _
    %v21 = vld [vmem:[%s0] sm:$0xff]
    %v22 = vld [vmem:[%s0 + $0x8] sm:$0xff]
    %v23 = vld [vmem:[%s2] sm:$0xff]
    %v24 = vld [vmem:[%s2 + $0x8] sm:$0xff]
    %v25 = vld [vmem:[%s2 + $0x10] sm:$0xff]
    %v26 = vld [vmem:[%s2 + $0x18] sm:$0xff]
    %v27 = vld [vmem:[%s1] sm:$0xff]
    %v28 = vld [vmem:[%s1 + $0x8] sm:$0xff]
    %v29 = vld [vmem:[%s3] sm:$0xff]
    %v30 = vld [vmem:[%s3 + $0x8] sm:$0xff]
    %v31 = vld [vmem:[%s3 + $0x10] sm:$0xff]
    %v32 = vld [vmem:[%s3 + $0x18] sm:$0xff]
    %vm33 = vcmask 261120
    %v35 = vsel %vm33, %v27, 0
    %v38 = vsel %vm33, %v28, 0
    %40 = vmatprep.subr.mxu0 0.0
    %41 = vmatpush1.msra.mxu0 %v29
    %42 = vmatprep.subr.mxu0 0.0
    %43 = vmatpush1.msra.mxu0 %v30
    %44 = vmatprep.subr.mxu0 0.0
    %45 = vmatpush1.msra.mxu0 %v31
    %46 = vmatprep.subr.mxu0 0.0
    %47 = vmatpush1.msra.mxu0 %v32
    %48 = vmatprep.subr.mxu0 0.0
    %49 = vmatpush1.msra.mxu0 0.0
    %50 = vmatprep.subr.mxu0 0.0
    %51 = vmatpush1.msra.mxu0 0.0
    %52 = vmatprep.subr.mxu0 0.0
    %53 = vmatpush1.msra.mxu0 0.0
    %54 = vmatprep.subr.mxu0 0.0
    %55 = vmatpush1.msra.mxu0 0.0
    %56 = vmatprep.subr.mxu0 0.0
    %57 = vmatpush1.msra.mxu0 0.0
    %58 = vmatprep.subr.mxu0 0.0
    %59 = vmatpush1.msra.mxu0 0.0
    %60 = vmatprep.subr.mxu0 0.0
    %61 = vmatpush1.msra.mxu0 0.0
    %62 = vmatprep.subr.mxu0 0.0
    %63 = vmatpush1.msra.mxu0 0.0
    %64 = vmatprep.subr.mxu0 0.0
    %65 = vmatpush1.msra.mxu0 0.0
    %66 = vmatprep.subr.mxu0 0.0
    %67 = vmatpush1.msra.mxu0 0.0
    %68 = vmatprep.subr.mxu0 0.0
    %69 = vmatpush1.msra.mxu0 0.0
    %70 = vmatprep.subr.mxu0 0.0
    %71 = vmatpush1.msra.mxu0 0.0
    %72 = vmatprep.subr.mxu0 0.0
    %73 = vmatpush1.msra.mxu0 0.0
    %74 = vmatprep.subr.mxu0 0.0
    %75 = vmatpush1.msra.mxu0 0.0
    %76 = vmatprep.subr.mxu0 0.0
    %77 = vmatpush1.msra.mxu0 0.0
    %78 = vmatprep.subr.mxu0 0.0
    %79 = vmatpush1.msra.mxu0 0.0
    %80 = vmatprep.subr.mxu0 0.0
    %81 = vmatpush1.msra.mxu0 0.0
    %82 = vmatprep.subr.mxu0 0.0
    %83 = vmatpush1.msra.mxu0 0.0
    %84 = vmatprep.subr.mxu0 0.0
    %85 = vmatpush1.msra.mxu0 0.0
    %86 = vmatprep.subr.mxu0 0.0
    %87 = vmatpush1.msra.mxu0 0.0
    %88 = vmatprep.subr.mxu0 0.0
    %89 = vmatpush1.msra.mxu0 0.0
    %90 = vmatprep.subr.mxu0 0.0
    %91 = vmatpush1.msra.mxu0 0.0
    %92 = vmatprep.subr.mxu0 0.0
    %93 = vmatpush1.msra.mxu0 0.0
    %94 = vmatprep.subr.mxu0 0.0
    %95 = vmatpush1.msra.mxu0 0.0
    %96 = vmatprep.subr.mxu0 0.0
    %97 = vmatpush1.msra.mxu0 0.0
    %98 = vmatprep.subr.mxu0 0.0
    %99 = vmatpush1.msra.mxu0 0.0
    %100 = vmatprep.subr.mxu0 0.0
    %101 = vmatpush1.msra.mxu0 0.0
    %102 = vmatprep.subr.mxu0 0.0
    %103 = vmatpush1.msra.mxu0 0.0
    %104 = vmatprep.mubr.f32.mxu0 0.0
    %105 = vmatmul.mubr.f32.gmra.mrb[0].mxu0 %v35
    %v106 = vpop.f32.mrb[0].mxu0
    %v107 = vadd.f32 0.0, %v106
    %v108 = vpop.f32.mrb[0].mxu0
    %109 = vmatprep.mubr.f32.mxu0 0.0
    %110 = vmatmul.mubr.f32.gmra.mrb[0].mxu0 %v38
    %v111 = vpop.f32.mrb[0].mxu0
    %v112 = vadd.f32 0.0, %v111
    %v113 = vpop.f32.mrb[0].mxu0
    %114 = vdwg.mxu0
    %v116 = vsel %vm33, %v21, 0
    %v119 = vsel %vm33, %v22, 0
    %121 = vmatprep.subr.mxu0 0.0
    %122 = vmatpush1.msra.mxu0 %v23
    %123 = vmatprep.subr.mxu0 0.0
    %124 = vmatpush1.msra.mxu0 %v24
    %125 = vmatprep.subr.mxu0 0.0
    %126 = vmatpush1.msra.mxu0 %v25
    %127 = vmatprep.subr.mxu0 0.0
    %128 = vmatpush1.msra.mxu0 %v26
    %129 = vmatprep.subr.mxu0 0.0
    %130 = vmatpush1.msra.mxu0 0.0
    %131 = vmatprep.subr.mxu0 0.0
    %132 = vmatpush1.msra.mxu0 0.0
    %133 = vmatprep.subr.mxu0 0.0
    %134 = vmatpush1.msra.mxu0 0.0
    %135 = vmatprep.subr.mxu0 0.0
    %136 = vmatpush1.msra.mxu0 0.0
    %137 = vmatprep.subr.mxu0 0.0
    %138 = vmatpush1.msra.mxu0 0.0
    %139 = vmatprep.subr.mxu0 0.0
    %140 = vmatpush1.msra.mxu0 0.0
    %141 = vmatprep.subr.mxu0 0.0
    %142 = vmatpush1.msra.mxu0 0.0
    %143 = vmatprep.subr.mxu0 0.0
    %144 = vmatpush1.msra.mxu0 0.0
    %145 = vmatprep.subr.mxu0 0.0
    %146 = vmatpush1.msra.mxu0 0.0
    %147 = vmatprep.subr.mxu0 0.0
    %148 = vmatpush1.msra.mxu0 0.0
    %149 = vmatprep.subr.mxu0 0.0
    %150 = vmatpush1.msra.mxu0 0.0
    %151 = vmatprep.subr.mxu0 0.0
    %152 = vmatpush1.msra.mxu0 0.0
    %153 = vmatprep.subr.mxu0 0.0
    %154 = vmatpush1.msra.mxu0 0.0
    %155 = vmatprep.subr.mxu0 0.0
    %156 = vmatpush1.msra.mxu0 0.0
    %157 = vmatprep.subr.mxu0 0.0
    %158 = vmatpush1.msra.mxu0 0.0
    %159 = vmatprep.subr.mxu0 0.0
    %160 = vmatpush1.msra.mxu0 0.0
    %161 = vmatprep.subr.mxu0 0.0
    %162 = vmatpush1.msra.mxu0 0.0
    %163 = vmatprep.subr.mxu0 0.0
    %164 = vmatpush1.msra.mxu0 0.0
    %165 = vmatprep.subr.mxu0 0.0
    %166 = vmatpush1.msra.mxu0 0.0
    %167 = vmatprep.subr.mxu0 0.0
    %168 = vmatpush1.msra.mxu0 0.0
    %169 = vmatprep.subr.mxu0 0.0
    %170 = vmatpush1.msra.mxu0 0.0
    %171 = vmatprep.subr.mxu0 0.0
    %172 = vmatpush1.msra.mxu0 0.0
    %173 = vmatprep.subr.mxu0 0.0
    %174 = vmatpush1.msra.mxu0 0.0
    %175 = vmatprep.subr.mxu0 0.0
    %176 = vmatpush1.msra.mxu0 0.0
    %177 = vmatprep.subr.mxu0 0.0
    %178 = vmatpush1.msra.mxu0 0.0
    %179 = vmatprep.subr.mxu0 0.0
    %180 = vmatpush1.msra.mxu0 0.0
    %181 = vmatprep.subr.mxu0 0.0
    %182 = vmatpush1.msra.mxu0 0.0
    %183 = vmatprep.subr.mxu0 0.0
    %184 = vmatpush1.msra.mxu0 0.0
    %185 = vmatprep.mubr.f32.mxu0 0.0
    %186 = vmatmul.mubr.f32.gmra.mrb[0].mxu0 %v116
    %v187 = vpop.f32.mrb[0].mxu0
    %v188 = vadd.f32 %v107, %v187
    %v189 = vpop.f32.mrb[0].mxu0
    %190 = vmatprep.mubr.f32.mxu0 0.0
    %191 = vmatmul.mubr.f32.gmra.mrb[0].mxu0 %v119
    %v192 = vpop.f32.mrb[0].mxu0
    %v193 = vadd.f32 %v112, %v192
    %v194 = vpop.f32.mrb[0].mxu0
    %195 = vdwg.mxu0
    %v196 = vld [vmem:[%s4] sm:$0x1]
    %v198 = vlaneseq
    %v199 = vshrl.u32 %v198, 7
    %v200 = vsub.s32 0, %v199
    %v201 = vrot.slane %v196, %v200
    %v203 = vadd.f32 %v188, %v201
    %v204 = vadd.f32 %v193, %v201
    %vm205 = vcmask 130048
    %206 = vst.msk [vmem:[#allocation2] sm:$0xff] %vm205, %v203
    %207 = vst.msk [vmem:[#allocation2 + $0x8] sm:$0xff] %vm205, %v204
    // Predicated region
    $region22: #{tpu_custom_call.1} parent=1 // pred_check
      _
    $region23: #{tpu_custom_call.1} parent=1 // pred_check_branch
      %209 = sbr.rel (0) target = $region25
    $region24: #{tpu_custom_call.1} parent=1 // pred_region
      %s211 = ssub.s32 256, 256
      %212 = vsyncadd [#allocation3], %s211
      %s213 = sshll.u32 [#allocation2], 4
      %s214 = int_to_ptr.vmem [resolvable:$true] %s213
      %219 = dma.vmem_to_hbm [thread:$0]  %s214, 256, %s5, [#allocation3], 128, 128, 8
    $region25: #{tpu_custom_call.1} parent=1 // pred_fallthru
      _
    // Predicated region
    $region26: #{tpu_custom_call.1} parent=1 // pred_check
      _
    $region27: #{tpu_custom_call.1} parent=1 // pred_check_branch
      %221 = sbr.rel (0) target = $region29
    $region28: #{tpu_custom_call.1} parent=1 // pred_region
      %222 = dma.done [#allocation3], 256
    $region29: #{tpu_custom_call.1} parent=1 // pred_fallthru
      _
    %223 = vsyncpa [#allocation3], 1

// kernel: tpu_custom_call.1
$region0: #{tpu_custom_call.1}
  #allocation0 [shape = 'u32[]', space=smem, size = 0x4, offset = 0x4, fixed_abs, tag = 'smem constant byte address 0x4 - core index']
  #allocation1 [shape = 'u32[144,128]{1,0:T(1,128)}', space=vmem, size = 0x12000, scoped, tag = 'internal scratch']
  %s0 = inlined_call_operand.vmem [shape: f32[16,32], index: 0, kind: input, shape index: {}]
  %s1 = inlined_call_operand.vmem [shape: f32[16,32], index: 1, kind: input, shape index: {}]
  %s2 = inlined_call_operand.vmem [shape: f32[32,16], index: 2, kind: input, shape index: {}]
  %s3 = inlined_call_operand.vmem [shape: f32[32,16], index: 3, kind: input, shape index: {}]
  %s4 = inlined_call_operand.vmem [shape: f32[1,16], index: 4, kind: input, shape index: {}]
  %s5 = inlined_call_operand.hbm [shape: f32[16,16], index: 5, kind: output, shape index: {}]
  %s6 = sld [smem:[#allocation0]]
  $region30: #{tpu_custom_call.1} parent=0
    _
  %s8 = ssub.s32 1, %s6
  %s9 = scalar_select 0, %s8, %s6
  $region1: #{tpu_custom_call.1} parent=0
    #allocation2 [shape = 'u8[8192]{0}', space=vmem, size = 0x2000, scoped, tag = 'output window, operand 0, single buffered']
    #allocation3 [shape = 's32[1]{0}', space=sflag, size = 0x4, scoped, tag = 'scoped memory for tpu_custom_call.1']
    %10 = vsyncpa [#allocation3], 0
    // Predicated region
    $region2: #{tpu_custom_call.1} parent=1 // pred_check
      _
    $region3: #{tpu_custom_call.1} parent=1 // pred_check_branch
      %12 = sbr.rel (0) target = $region5
    $region4: #{tpu_custom_call.1} parent=1 // pred_region
      _
    $region5: #{tpu_custom_call.1} parent=1 // pred_fallthru
      _
    // Predicated region
    $region6: #{tpu_custom_call.1} parent=1 // pred_check
      _
    $region7: #{tpu_custom_call.1} parent=1 // pred_check_branch
      %14 = sbr.rel (0) target = $region9
    $region8: #{tpu_custom_call.1} parent=1 // pred_region
      _
    $region9: #{tpu_custom_call.1} parent=1 // pred_fallthru
      _
    // Predicated region
    $region10: #{tpu_custom_call.1} parent=1 // pred_check
      _
    $region11: #{tpu_custom_call.1} parent=1 // pred_check_branch
      %16 = sbr.rel (0) target = $region13
    $region12: #{tpu_custom_call.1} parent=1 // pred_region
      _
    $region13: #{tpu_custom_call.1} parent=1 // pred_fallthru
      _
    // Predicated region
    $region14: #{tpu_custom_call.1} parent=1 // pred_check
      _
    $region15: #{tpu_custom_call.1} parent=1 // pred_check_branch
      %18 = sbr.rel (0) target = $region17
    $region16: #{tpu_custom_call.1} parent=1 // pred_region
      _
    $region17: #{tpu_custom_call.1} parent=1 // pred_fallthru
      _
    // Predicated region
    $region18: #{tpu_custom_call.1} parent=1 // pred_check
      _
    $region19: #{tpu_custom_call.1} parent=1 // pred_check_branch
      %20 = sbr.rel (0) target = $region21
    $region20: #{tpu_custom_call.1} parent=1 // pred_region
      _
    $region21: #{tpu_custom_call.1} parent=1 // pred_fallthru
      _
    %v21 = vld [vmem:[%s0] sm:$0xff]
    %v22 = vld [vmem:[%s0 + $0x8] sm:$0xff]
    %v23 = vld [vmem:[%s2] sm:$0xff]
    %v24 = vld [vmem:[%s2 + $0x8] sm:$0xff]
    %v25 = vld [vmem:[%s2 + $0x10] sm:$0xff]
    %v26 = vld [vmem:[%s2 + $0x18] sm:$0xff]
    %v27 = vld [vmem:[%s1] sm:$0xff]
    %v28 = vld [vmem:[%s1 + $0x8] sm:$0xff]
    %v29 = vld [vmem:[%s3] sm:$0xff]
    %v30 = vld [vmem:[%s3 + $0x8] sm:$0xff]
    %v31 = vld [vmem:[%s3 + $0x10] sm:$0xff]
    %v32 = vld [vmem:[%s3 + $0x18] sm:$0xff]
    %vm33 = vcmask 261120
    %v35 = vsel %vm33, %v27, 0
    %v38 = vsel %vm33, %v28, 0
    %40 = vmatprep.subr.mxu0 0.0
    %41 = vmatpush1.msra.mxu0 %v29
    %42 = vmatprep.subr.mxu0 0.0
    %43 = vmatpush1.msra.mxu0 %v30
    %44 = vmatprep.subr.mxu0 0.0
    %45 = vmatpush1.msra.mxu0 %v31
    %46 = vmatprep.subr.mxu0 0.0
    %47 = vmatpush1.msra.mxu0 %v32
    %48 = vmatprep.subr.mxu0 0.0
    %49 = vmatpush1.msra.mxu0 0.0
    %50 = vmatprep.subr.mxu0 0.0
    %51 = vmatpush1.msra.mxu0 0.0
    %52 = vmatprep.subr.mxu0 0.0
    %53 = vmatpush1.msra.mxu0 0.0
    %54 = vmatprep.subr.mxu0 0.0
    %55 = vmatpush1.msra.mxu0 0.0
    %56 = vmatprep.subr.mxu0 0.0
    %57 = vmatpush1.msra.mxu0 0.0
    %58 = vmatprep.subr.mxu0 0.0
    %59 = vmatpush1.msra.mxu0 0.0
    %60 = vmatprep.subr.mxu0 0.0
    %61 = vmatpush1.msra.mxu0 0.0
    %62 = vmatprep.subr.mxu0 0.0
    %63 = vmatpush1.msra.mxu0 0.0
    %64 = vmatprep.subr.mxu0 0.0
    %65 = vmatpush1.msra.mxu0 0.0
    %66 = vmatprep.subr.mxu0 0.0
    %67 = vmatpush1.msra.mxu0 0.0
    %68 = vmatprep.subr.mxu0 0.0
    %69 = vmatpush1.msra.mxu0 0.0
    %70 = vmatprep.subr.mxu0 0.0
    %71 = vmatpush1.msra.mxu0 0.0
    %72 = vmatprep.subr.mxu0 0.0
    %73 = vmatpush1.msra.mxu0 0.0
    %74 = vmatprep.subr.mxu0 0.0
    %75 = vmatpush1.msra.mxu0 0.0
    %76 = vmatprep.subr.mxu0 0.0
    %77 = vmatpush1.msra.mxu0 0.0
    %78 = vmatprep.subr.mxu0 0.0
    %79 = vmatpush1.msra.mxu0 0.0
    %80 = vmatprep.subr.mxu0 0.0
    %81 = vmatpush1.msra.mxu0 0.0
    %82 = vmatprep.subr.mxu0 0.0
    %83 = vmatpush1.msra.mxu0 0.0
    %84 = vmatprep.subr.mxu0 0.0
    %85 = vmatpush1.msra.mxu0 0.0
    %86 = vmatprep.subr.mxu0 0.0
    %87 = vmatpush1.msra.mxu0 0.0
    %88 = vmatprep.subr.mxu0 0.0
    %89 = vmatpush1.msra.mxu0 0.0
    %90 = vmatprep.subr.mxu0 0.0
    %91 = vmatpush1.msra.mxu0 0.0
    %92 = vmatprep.subr.mxu0 0.0
    %93 = vmatpush1.msra.mxu0 0.0
    %94 = vmatprep.subr.mxu0 0.0
    %95 = vmatpush1.msra.mxu0 0.0
    %96 = vmatprep.subr.mxu0 0.0
    %97 = vmatpush1.msra.mxu0 0.0
    %98 = vmatprep.subr.mxu0 0.0
    %99 = vmatpush1.msra.mxu0 0.0
    %100 = vmatprep.subr.mxu0 0.0
    %101 = vmatpush1.msra.mxu0 0.0
    %102 = vmatprep.subr.mxu0 0.0
    %103 = vmatpush1.msra.mxu0 0.0
    %104 = vmatprep.mubr.f32.mxu0 0.0
    %105 = vmatmul.mubr.f32.gmra.mrb[0].mxu0 %v35
    %v106 = vpop.f32.mrb[0].mxu0
    %v107 = vadd.f32 0.0, %v106
    %v108 = vpop.f32.mrb[0].mxu0
    %109 = vmatprep.mubr.f32.mxu0 0.0
    %110 = vmatmul.mubr.f32.gmra.mrb[0].mxu0 %v38
    %v111 = vpop.f32.mrb[0].mxu0
    %v112 = vadd.f32 0.0, %v111
    %v113 = vpop.f32.mrb[0].mxu0
    %114 = vdwg.mxu0
    %v116 = vsel %vm33, %v21, 0
    %v119 = vsel %vm33, %v22, 0
    %121 = vmatprep.subr.mxu0 0.0
    %122 = vmatpush1.msra.mxu0 %v23
    %123 = vmatprep.subr.mxu0 0.0
    %124 = vmatpush1.msra.mxu0 %v24
    %125 = vmatprep.subr.mxu0 0.0
    %126 = vmatpush1.msra.mxu0 %v25
    %127 = vmatprep.subr.mxu0 0.0
    %128 = vmatpush1.msra.mxu0 %v26
    %129 = vmatprep.subr.mxu0 0.0
    %130 = vmatpush1.msra.mxu0 0.0
    %131 = vmatprep.subr.mxu0 0.0
    %132 = vmatpush1.msra.mxu0 0.0
    %133 = vmatprep.subr.mxu0 0.0
    %134 = vmatpush1.msra.mxu0 0.0
    %135 = vmatprep.subr.mxu0 0.0
    %136 = vmatpush1.msra.mxu0 0.0
    %137 = vmatprep.subr.mxu0 0.0
    %138 = vmatpush1.msra.mxu0 0.0
    %139 = vmatprep.subr.mxu0 0.0
    %140 = vmatpush1.msra.mxu0 0.0
    %141 = vmatprep.subr.mxu0 0.0
    %142 = vmatpush1.msra.mxu0 0.0
    %143 = vmatprep.subr.mxu0 0.0
    %144 = vmatpush1.msra.mxu0 0.0
    %145 = vmatprep.subr.mxu0 0.0
    %146 = vmatpush1.msra.mxu0 0.0
    %147 = vmatprep.subr.mxu0 0.0
    %148 = vmatpush1.msra.mxu0 0.0
    %149 = vmatprep.subr.mxu0 0.0
    %150 = vmatpush1.msra.mxu0 0.0
    %151 = vmatprep.subr.mxu0 0.0
    %152 = vmatpush1.msra.mxu0 0.0
    %153 = vmatprep.subr.mxu0 0.0
    %154 = vmatpush1.msra.mxu0 0.0
    %155 = vmatprep.subr.mxu0 0.0
    %156 = vmatpush1.msra.mxu0 0.0
    %157 = vmatprep.subr.mxu0 0.0
    %158 = vmatpush1.msra.mxu0 0.0
    %159 = vmatprep.subr.mxu0 0.0
    %160 = vmatpush1.msra.mxu0 0.0
    %161 = vmatprep.subr.mxu0 0.0
    %162 = vmatpush1.msra.mxu0 0.0
    %163 = vmatprep.subr.mxu0 0.0
    %164 = vmatpush1.msra.mxu0 0.0
    %165 = vmatprep.subr.mxu0 0.0
    %166 = vmatpush1.msra.mxu0 0.0
    %167 = vmatprep.subr.mxu0 0.0
    %168 = vmatpush1.msra.mxu0 0.0
    %169 = vmatprep.subr.mxu0 0.0
    %170 = vmatpush1.msra.mxu0 0.0
    %171 = vmatprep.subr.mxu0 0.0
    %172 = vmatpush1.msra.mxu0 0.0
    %173 = vmatprep.subr.mxu0 0.0
    %174 = vmatpush1.msra.mxu0 0.0
    %175 = vmatprep.subr.mxu0 0.0
    %176 = vmatpush1.msra.mxu0 0.0
    %177 = vmatprep.subr.mxu0 0.0
    %178 = vmatpush1.msra.mxu0 0.0
    %179 = vmatprep.subr.mxu0 0.0
    %180 = vmatpush1.msra.mxu0 0.0
    %181 = vmatprep.subr.mxu0 0.0
    %182 = vmatpush1.msra.mxu0 0.0
    %183 = vmatprep.subr.mxu0 0.0
    %184 = vmatpush1.msra.mxu0 0.0
    %185 = vmatprep.mubr.f32.mxu0 0.0
    %186 = vmatmul.mubr.f32.gmra.mrb[0].mxu0 %v116
    %v187 = vpop.f32.mrb[0].mxu0
    %v188 = vadd.f32 %v107, %v187
    %v189 = vpop.f32.mrb[0].mxu0
    %190 = vmatprep.mubr.f32.mxu0 0.0
    %191 = vmatmul.mubr.f32.gmra.mrb[0].mxu0 %v119
    %v192 = vpop.f32.mrb[0].mxu0
    %v193 = vadd.f32 %v112, %v192
    %v194 = vpop.f32.mrb[0].mxu0
    %195 = vdwg.mxu0
    %v196 = vld [vmem:[%s4] sm:$0x1]
    %v198 = vlaneseq
    %v199 = vshrl.u32 %v198, 7
    %v200 = vsub.s32 0, %v199
    %v201 = vrot.slane %v196, %v200
    %v203 = vadd.f32 %v188, %v201
    %v204 = vadd.f32 %v193, %v201
    %vm205 = vcmask 130048
    %206 = vst.msk [vmem:[#allocation2] sm:$0xff] %vm205, %v203
    %207 = vst.msk [vmem:[#allocation2 + $0x8] sm:$0xff] %vm205, %v204
    // Predicated region
    $region22: #{tpu_custom_call.1} parent=1 // pred_check
      _
    $region23: #{tpu_custom_call.1} parent=1 // pred_check_branch
      %209 = sbr.rel (0) target = $region25
    $region24: #{tpu_custom_call.1} parent=1 // pred_region
      %s211 = ssub.s32 256, 256
      %212 = vsyncadd [#allocation3], %s211
      %s213 = sshll.u32 [#allocation2], 4
      %s214 = int_to_ptr.vmem [resolvable:$true] %s213
      %219 = dma.vmem_to_hbm [thread:$0]  %s214, 256, %s5, [#allocation3], 128, 128, 8
    $region25: #{tpu_custom_call.1} parent=1 // pred_fallthru
      _
    // Predicated region
    $region26: #{tpu_custom_call.1} parent=1 // pred_check
      _
    $region27: #{tpu_custom_call.1} parent=1 // pred_check_branch
      %221 = sbr.rel (0) target = $region29
    $region28: #{tpu_custom_call.1} parent=1 // pred_region
      %222 = dma.done [#allocation3], 256
    $region29: #{tpu_custom_call.1} parent=1 // pred_fallthru
      _
    %223 = vsyncpa [#allocation3], 1

</llo_original>
